<compile_context>
chip_gen: v6e
topology: v6e:2x2x1
jax: 0.10.0
libtpu: 0.0.40
codegen_flags: <defaults>
</compile_context>

<pallas_src>
import functools

import jax
import jax.numpy as jnp
from jax.experimental import pallas as pl
from jax.experimental.pallas import tpu as pltpu


_GELU_C = 0.7978845608028654  # sqrt(2 / pi)


def _round_up(x, m):
    return (x + m - 1) // m * m


def _gelu(x):
    # tanh-approximate GELU; tanh goes to the EUP slot.
    return 0.5 * x * (1.0 + jnp.tanh(_GELU_C * (x + 0.044715 * x * x * x)))


def _layer_norm(x, gamma, beta, eps):
    mean = jnp.mean(x, axis=-1, keepdims=True)
    c = x - mean
    var = jnp.mean(c * c, axis=-1, keepdims=True)
    return c * jax.lax.rsqrt(var + eps) * gamma + beta


def mlm_head_pos_kernel(h_ref, pos_ref, w1p_ref, w1h_ref, b1_ref,
                        ga_ref, ba_ref, w2_ref, b2_ref, gb_ref, bb_ref,
                        wdec_ref, bdec_ref, o_ref, mlp_ref, *, eps):
    """grid = (row_tiles, vocab_tiles).

    The MLP trunk (both linears, gelus, layernorms) runs ONCE per row tile
    (at vocab tile 0) into VMEM scratch; every vocab tile only runs the
    decoder matmul against its [H, tv] weight slab.
    """

    @pl.when(pl.program_id(1) == 0)
    def _compute_trunk():
        x = h_ref[...].astype(jnp.float32)                        # [tm, H]
        # concat([pos, hidden]) @ W1^T  ==  pos @ W1p + hidden @ W1h
        pre1 = (jnp.dot(pos_ref[...], w1p_ref[...],
                        preferred_element_type=jnp.float32)
                + jnp.dot(x, w1h_ref[...],
                          preferred_element_type=jnp.float32)
                + b1_ref[...])
        n1 = _layer_norm(_gelu(pre1), ga_ref[...], ba_ref[...], eps)
        pre2 = (jnp.dot(n1, w2_ref[...],
                        preferred_element_type=jnp.float32)
                + b2_ref[...])
        n2 = _layer_norm(_gelu(pre2), gb_ref[...], bb_ref[...], eps)
        mlp_ref[...] = n2.astype(mlp_ref.dtype)                   # bf16 store

    scores = (jnp.dot(mlp_ref[...], wdec_ref[...],
                      preferred_element_type=jnp.float32)
              + bdec_ref[...])                                     # [tm, tv]
    o_ref[...] = scores.astype(o_ref.dtype)


def prepare_mlm_head_pos_params(params, *, decoder_dtype=jnp.bfloat16):
    """One-time parameter preparation, hoisted out of the per-call path.

    Input `params` uses torch layouts: pos_table [max_pos, P], w1 [H, H+P],
    b1 [H], gamma_a/beta_a [H], w2 [H, H], b2 [H], gamma_b/beta_b [H],
    w_dec [V, H] (tied embedding table), bias_dec [V].
    """
    pos_table = params["pos_table"].astype(jnp.float32)
    P = pos_table.shape[1]
    H = params["w2"].shape[0]
    w1 = params["w1"].astype(jnp.float32)                          # [H, H+P]
    return {
        "pos_table": pos_table,                                    # [max_pos, P]
        "w1p": jnp.transpose(w1[:, :P]),                           # [P, H]
        "w1h": jnp.transpose(w1[:, P:]),                           # [H, H]
        "b1": params["b1"].astype(jnp.float32).reshape(1, H),
        "ga": params["gamma_a"].astype(jnp.float32).reshape(1, H),
        "ba": params["beta_a"].astype(jnp.float32).reshape(1, H),
        "w2": jnp.transpose(params["w2"].astype(jnp.float32)),     # [H, H]
        "b2": params["b2"].astype(jnp.float32).reshape(1, H),
        "gb": params["gamma_b"].astype(jnp.float32).reshape(1, H),
        "bb": params["beta_b"].astype(jnp.float32).reshape(1, H),
        "wdec": jnp.transpose(params["w_dec"]).astype(decoder_dtype),  # [H, V]
        "bdec": params["bias_dec"].astype(jnp.float32).reshape(1, -1),  # [1, V]
    }


def _invariant_spec(shape):
    """Single-buffered BlockSpec for grid-invariant operands (reclaims the
    dead second pipeline buffer).  Falls back to default buffering if the
    installed jax does not expose pipeline_mode."""
    idx = lambda i, j: (0,) * len(shape)
    try:
        return pl.BlockSpec(shape, idx, pipeline_mode=pl.Buffered(1))
    except TypeError:
        return pl.BlockSpec(shape, idx)


def masked_lm_prediction_head_pos(hidden_states, prepared, *, eps=1e-12,
                                  vocab_tile=1024, row_tile=1024):
    """hidden_states: [B, L, H]; `prepared` from prepare_mlm_head_pos_params."""
    assert vocab_tile % 128 == 0, "vocab_tile must be a multiple of 128"
    assert row_tile % 8 == 0, "row_tile must be a multiple of 8"

    B, L, H = hidden_states.shape
    P = prepared["pos_table"].shape[1]
    wdec = prepared["wdec"]                                        # [H, V]
    bdec = prepared["bdec"]                                        # [1, V]
    V = wdec.shape[1]

    # position_ids = arange(L) -> embedding lookup is a static row slice;
    # broadcast over batch and flatten alongside the hidden rows.
    pos = prepared["pos_table"][:L]                                # [L, P]
    M = B * L
    hidden_flat = hidden_states.reshape(M, H)
    pos_flat = jnp.broadcast_to(pos[None], (B, L, P)).reshape(M, P)

    tm = min(row_tile, _round_up(M, 8))
    M_pad = _round_up(M, tm)
    tv = min(vocab_tile, _round_up(V, 128))
    V_pad = _round_up(V, tv)

    if M_pad != M:
        hidden_flat = jnp.pad(hidden_flat, ((0, M_pad - M), (0, 0)))
        pos_flat = jnp.pad(pos_flat, ((0, M_pad - M), (0, 0)))
    if V_pad != V:
        wdec = jnp.pad(wdec, ((0, 0), (0, V_pad - V)))
        bdec = jnp.pad(bdec, ((0, 0), (0, V_pad - V)))

    nm = M_pad // tm
    nv = V_pad // tv

    in_bytes = hidden_states.dtype.itemsize
    dec_bytes = jnp.dtype(wdec.dtype).itemsize
    out_bytes = in_bytes

    # Explicit VMEM budget: double buffers for tiles that change index,
    # single buffers for invariant trunk weights, plus the trunk scratch.
    budget = (2 * tm * H * in_bytes                 # hidden rows
              + 2 * tm * P * 4                      # pos rows
              + (P * H + 2 * H * H + 6 * 8 * H) * 4  # trunk weights (1-buf)
              + 2 * H * tv * dec_bytes              # decoder weight tile
              + 2 * 8 * tv * 4                      # decoder bias tile
              + 2 * tm * tv * out_bytes             # output tile
              + tm * H * dec_bytes)                 # trunk scratch
    vmem_limit = int(budget * 1.3) + (4 << 20)
    try:
        vmem_cap = pltpu.get_tpu_info().vmem_capacity_bytes
    except Exception:
        vmem_cap = 64 << 20                         # conservative (v7x)
    vmem_limit = max(min(vmem_limit, int(vmem_cap * 0.9)), 16 << 20)

    kernel = functools.partial(mlm_head_pos_kernel, eps=eps)

    flops = 2 * M * (P * H + 2 * H * H + H * V)
    transcendentals = 2 * M * H                      # tanh in both gelus
    bytes_accessed = (M * H * in_bytes + M * P * 4
                      + (P * H + 2 * H * H + 6 * H) * 4
                      + nm * (H * V_pad * dec_bytes + V_pad * 4)  # wdec restream
                      + M * V * out_bytes)

    out_flat = pl.pallas_call(
        kernel,
        out_shape=jax.ShapeDtypeStruct((M_pad, V_pad), hidden_states.dtype),
        grid_spec=pltpu.PrefetchScalarGridSpec(
            num_scalar_prefetch=0,
            grid=(nm, nv),
            in_specs=[
                pl.BlockSpec((tm, H), lambda i, j: (i, 0)),   # hidden rows
                pl.BlockSpec((tm, P), lambda i, j: (i, 0)),   # pos rows
                _invariant_spec((P, H)),                      # W1 pos cols
                _invariant_spec((H, H)),                      # W1 hidden cols
                _invariant_spec((1, H)),                      # b1
                _invariant_spec((1, H)),                      # LN-a gamma
                _invariant_spec((1, H)),                      # LN-a beta
                _invariant_spec((H, H)),                      # W2
                _invariant_spec((1, H)),                      # b2
                _invariant_spec((1, H)),                      # LN-b gamma
                _invariant_spec((1, H)),                      # LN-b beta
                pl.BlockSpec((H, tv), lambda i, j: (0, j)),   # decoder W^T tile
                pl.BlockSpec((1, tv), lambda i, j: (0, j)),   # decoder bias tile
            ],
            out_specs=pl.BlockSpec((tm, tv), lambda i, j: (i, j)),
            scratch_shapes=[pltpu.VMEM((tm, H), wdec.dtype)],
        ),
        compiler_params=pltpu.CompilerParams(
            dimension_semantics=("parallel", "arbitrary"),
            vmem_limit_bytes=vmem_limit),
        cost_estimate=pl.CostEstimate(
            flops=flops, transcendentals=transcendentals,
            bytes_accessed=bytes_accessed),
    )(hidden_flat, pos_flat,
      prepared["w1p"], prepared["w1h"], prepared["b1"],
      prepared["ga"], prepared["ba"],
      prepared["w2"], prepared["b2"],
      prepared["gb"], prepared["bb"],
      wdec, bdec)

    return out_flat[:M, :V].reshape(B, L, V)


def masked_lm_prediction_head_pos_ref(hidden_states, params, *, eps=1e-12):
    """Pure-JAX reference mirroring the PyTorch forward (all f32)."""
    B, L, _ = hidden_states.shape
    pos = params["pos_table"][:L]
    pos_b = jnp.broadcast_to(pos[None], (B,) + pos.shape)
    x = jnp.concatenate([pos_b, hidden_states], axis=-1)
    h = _gelu(x @ params["w1"].T + params["b1"])
    h = _layer_norm(h, params["gamma_a"], params["beta_a"], eps)
    h = _gelu(h @ params["w2"].T + params["b2"])
    h = _layer_norm(h, params["gamma_b"], params["beta_b"], eps)
    return h @ params["w_dec"].T + params["bias_dec"]


if __name__ == "__main__":
    B, L, H, P, V, MAX_POS = 2, 8, 32, 32, 256, 64
    key = jax.random.PRNGKey(0)
    ks = jax.random.split(key, 12)

    hidden_states = jax.random.normal(ks[0], (B, L, H), jnp.float32)
    params = {
        "pos_table": 0.1 * jax.random.normal(ks[1], (MAX_POS, P), jnp.float32),
        "w1": 0.05 * jax.random.normal(ks[2], (H, H + P), jnp.float32),
        "b1": 0.01 * jax.random.normal(ks[3], (H,), jnp.float32),
        "gamma_a": 1.0 + 0.01 * jax.random.normal(ks[4], (H,), jnp.float32),
        "beta_a": 0.01 * jax.random.normal(ks[5], (H,), jnp.float32),
        "w2": 0.05 * jax.random.normal(ks[6], (H, H), jnp.float32),
        "b2": 0.01 * jax.random.normal(ks[7], (H,), jnp.float32),
        "gamma_b": 1.0 + 0.01 * jax.random.normal(ks[8], (H,), jnp.float32),
        "beta_b": 0.01 * jax.random.normal(ks[9], (H,), jnp.float32),
        "w_dec": 0.05 * jax.random.normal(ks[10], (V, H), jnp.float32),
        "bias_dec": 0.01 * jax.random.normal(ks[11], (V,), jnp.float32),
    }

    ref = masked_lm_prediction_head_pos_ref(hidden_states, params)

    # f32 decoder path: tight check against the pure-JAX reference.
    prep_f32 = prepare_mlm_head_pos_params(params, decoder_dtype=jnp.float32)
    out_f32 = jax.block_until_ready(
        masked_lm_prediction_head_pos(hidden_states, prep_f32))
    assert out_f32.shape == (B, L, V), out_f32.shape
    err_f32 = float(jnp.max(jnp.abs(out_f32 - ref)))
    assert jnp.allclose(out_f32, ref, atol=1e-4, rtol=1e-4), err_f32

    # bf16 decoder path (default production config): looser tolerance since
    # the decoder matmul runs with bf16 operands (f32 accumulation).
    prep_bf16 = prepare_mlm_head_pos_params(params)
    out_bf16 = jax.block_until_ready(
        masked_lm_prediction_head_pos(hidden_states, prep_bf16))
    assert out_bf16.shape == (B, L, V), out_bf16.shape
    err_bf16 = float(jnp.max(jnp.abs(out_bf16 - ref)))
    assert jnp.allclose(out_bf16, ref, atol=3e-2, rtol=3e-2), err_bf16

    print("KERNEL_OK")
</pallas_src>

<mosaic_0001>
module attributes {stable_mosaic.version = 11 : i64} {
  func.func @mlm_head_pos_kernel(%arg0: i32, %arg1: i32, %arg2: memref<16x32xf32, #tpu.memory_space<vmem>>, %arg3: memref<16x32xf32, #tpu.memory_space<vmem>>, %arg4: memref<32x32xf32, #tpu.memory_space<vmem>>, %arg5: memref<32x32xf32, #tpu.memory_space<vmem>>, %arg6: memref<1x32xf32, #tpu.memory_space<vmem>>, %arg7: memref<1x32xf32, #tpu.memory_space<vmem>>, %arg8: memref<1x32xf32, #tpu.memory_space<vmem>>, %arg9: memref<32x32xf32, #tpu.memory_space<vmem>>, %arg10: memref<1x32xf32, #tpu.memory_space<vmem>>, %arg11: memref<1x32xf32, #tpu.memory_space<vmem>>, %arg12: memref<1x32xf32, #tpu.memory_space<vmem>>, %arg13: memref<32x256xf32, #tpu.memory_space<vmem>>, %arg14: memref<1x256xf32, #tpu.memory_space<vmem>>, %arg15: memref<16x256xf32, #tpu.memory_space<vmem>>, %arg16: memref<16x32xf32, #tpu.memory_space<vmem>>) attributes {dimension_semantics = [#tpu.dimension_semantics<parallel>, #tpu.dimension_semantics<arbitrary>], iteration_bounds = array<i64: 1, 1>, scalar_prefetch = 0 : i64, scratch_operands = 1 : i64, tpu.core_type = #tpu.core_type<tc>, window_params = [{transform_indices = @transform_0, window_bounds = array<i64: 16, 32>}, {transform_indices = @transform_1, window_bounds = array<i64: 16, 32>}, {pipeline_mode = #tpu.pipeline_mode<synchronous>, transform_indices = @transform_2, window_bounds = array<i64: 32, 32>}, {pipeline_mode = #tpu.pipeline_mode<synchronous>, transform_indices = @transform_3, window_bounds = array<i64: 32, 32>}, {pipeline_mode = #tpu.pipeline_mode<synchronous>, transform_indices = @transform_4, window_bounds = array<i64: 1, 32>}, {pipeline_mode = #tpu.pipeline_mode<synchronous>, transform_indices = @transform_5, window_bounds = array<i64: 1, 32>}, {pipeline_mode = #tpu.pipeline_mode<synchronous>, transform_indices = @transform_6, window_bounds = array<i64: 1, 32>}, {pipeline_mode = #tpu.pipeline_mode<synchronous>, transform_indices = @transform_7, window_bounds = array<i64: 32, 32>}, {pipeline_mode = #tpu.pipeline_mode<synchronous>, transform_indices = @transform_8, window_bounds = array<i64: 1, 32>}, {pipeline_mode = #tpu.pipeline_mode<synchronous>, transform_indices = @transform_9, window_bounds = array<i64: 1, 32>}, {pipeline_mode = #tpu.pipeline_mode<synchronous>, transform_indices = @transform_10, window_bounds = array<i64: 1, 32>}, {transform_indices = @transform_11, window_bounds = array<i64: 32, 256>}, {transform_indices = @transform_12, window_bounds = array<i64: 1, 256>}, {transform_indices = @transform_13, window_bounds = array<i64: 16, 256>}]} {
    %c0_i32 = arith.constant 0 : i32
    %0 = arith.cmpi eq, %arg1, %c0_i32 : i32
    %1 = arith.extui %0 : i1 to i32
    %c0_i32_0 = arith.constant 0 : i32
    %2 = arith.cmpi ne, %1, %c0_i32_0 : i32
    scf.if %2 {
      %c0_8 = arith.constant 0 : index
      %c0_9 = arith.constant 0 : index
      %10 = vector.load %arg2[%c0_8, %c0_9] : memref<16x32xf32, #tpu.memory_space<vmem>>, vector<16x32xf32>
      %c0_10 = arith.constant 0 : index
      %c0_11 = arith.constant 0 : index
      %11 = vector.load %arg3[%c0_10, %c0_11] : memref<16x32xf32, #tpu.memory_space<vmem>>, vector<16x32xf32>
      %c0_12 = arith.constant 0 : index
      %c0_13 = arith.constant 0 : index
      %12 = vector.load %arg4[%c0_12, %c0_13] : memref<32x32xf32, #tpu.memory_space<vmem>>, vector<32x32xf32>
      %cst_14 = arith.constant dense<0.000000e+00> : vector<16x32xf32>
      %13 = tpu.matmul %11, %12, %cst_14 {dimension_numbers = #tpu.dot_dimension_numbers<[1], [0], [0], [1], [0, 0, 1, 1], [], []>} : vector<16x32xf32>, vector<32x32xf32>, vector<16x32xf32> -> vector<16x32xf32>
      %c0_15 = arith.constant 0 : index
      %c0_16 = arith.constant 0 : index
      %14 = vector.load %arg5[%c0_15, %c0_16] : memref<32x32xf32, #tpu.memory_space<vmem>>, vector<32x32xf32>
      %cst_17 = arith.constant dense<0.000000e+00> : vector<16x32xf32>
      %15 = tpu.matmul %10, %14, %cst_17 {dimension_numbers = #tpu.dot_dimension_numbers<[1], [0], [0], [1], [0, 0, 1, 1], [], []>} : vector<16x32xf32>, vector<32x32xf32>, vector<16x32xf32> -> vector<16x32xf32>
      %16 = arith.addf %13, %15 : vector<16x32xf32>
      %c0_18 = arith.constant 0 : index
      %c0_19 = arith.constant 0 : index
      %17 = vector.load %arg6[%c0_18, %c0_19] : memref<1x32xf32, #tpu.memory_space<vmem>>, vector<1x32xf32>
      %18 = vector.broadcast %17 : vector<1x32xf32> to vector<16x32xf32>
      %19 = arith.addf %16, %18 : vector<16x32xf32>
      %cst_20 = arith.constant 5.000000e-01 : f32
      %20 = vector.broadcast %cst_20 : f32 to vector<16x32xf32>
      %21 = arith.mulf %20, %19 : vector<16x32xf32>
      %cst_21 = arith.constant 4.471500e-02 : f32
      %22 = vector.broadcast %cst_21 : f32 to vector<16x32xf32>
      %23 = arith.mulf %22, %19 : vector<16x32xf32>
      %24 = arith.mulf %23, %19 : vector<16x32xf32>
      %25 = arith.mulf %24, %19 : vector<16x32xf32>
      %26 = arith.addf %19, %25 : vector<16x32xf32>
      %cst_22 = arith.constant 0.797884583 : f32
      %27 = vector.broadcast %cst_22 : f32 to vector<16x32xf32>
      %28 = arith.mulf %27, %26 : vector<16x32xf32>
      %29 = math.tanh %28 : vector<16x32xf32>
      %cst_23 = arith.constant 1.000000e+00 : f32
      %30 = vector.broadcast %cst_23 : f32 to vector<16x32xf32>
      %31 = arith.addf %30, %29 : vector<16x32xf32>
      %32 = arith.mulf %21, %31 : vector<16x32xf32>
      %c0_24 = arith.constant 0 : index
      %c0_25 = arith.constant 0 : index
      %33 = vector.load %arg7[%c0_24, %c0_25] : memref<1x32xf32, #tpu.memory_space<vmem>>, vector<1x32xf32>
      %c0_26 = arith.constant 0 : index
      %c0_27 = arith.constant 0 : index
      %34 = vector.load %arg8[%c0_26, %c0_27] : memref<1x32xf32, #tpu.memory_space<vmem>>, vector<1x32xf32>
      %cst_28 = arith.constant dense<0.000000e+00> : vector<16xf32>
      %35 = vector.multi_reduction <add>, %32, %cst_28 [1] : vector<16x32xf32> to vector<16xf32>
      %36 = vector.shape_cast %35 : vector<16xf32> to vector<16x1xf32>
      %cst_29 = arith.constant 3.200000e+01 : f32
      %37 = vector.broadcast %cst_29 : f32 to vector<16x1xf32>
      %38 = arith.divf %36, %37 : vector<16x1xf32>
      %39 = vector.broadcast %38 : vector<16x1xf32> to vector<16x32xf32>
      %40 = arith.subf %32, %39 : vector<16x32xf32>
      %41 = arith.mulf %40, %40 : vector<16x32xf32>
      %cst_30 = arith.constant dense<0.000000e+00> : vector<16xf32>
      %42 = vector.multi_reduction <add>, %41, %cst_30 [1] : vector<16x32xf32> to vector<16xf32>
      %43 = vector.shape_cast %42 : vector<16xf32> to vector<16x1xf32>
      %cst_31 = arith.constant 3.200000e+01 : f32
      %44 = vector.broadcast %cst_31 : f32 to vector<16x1xf32>
      %45 = arith.divf %43, %44 : vector<16x1xf32>
      %cst_32 = arith.constant 9.99999996E-13 : f32
      %46 = vector.broadcast %cst_32 : f32 to vector<16x1xf32>
      %47 = arith.addf %45, %46 : vector<16x1xf32>
      %48 = math.rsqrt %47 : vector<16x1xf32>
      %49 = vector.broadcast %48 : vector<16x1xf32> to vector<16x32xf32>
      %50 = arith.mulf %40, %49 : vector<16x32xf32>
      %51 = vector.broadcast %33 : vector<1x32xf32> to vector<16x32xf32>
      %52 = arith.mulf %50, %51 : vector<16x32xf32>
      %53 = vector.broadcast %34 : vector<1x32xf32> to vector<16x32xf32>
      %54 = arith.addf %52, %53 : vector<16x32xf32>
      %c0_33 = arith.constant 0 : index
      %c0_34 = arith.constant 0 : index
      %55 = vector.load %arg9[%c0_33, %c0_34] : memref<32x32xf32, #tpu.memory_space<vmem>>, vector<32x32xf32>
      %cst_35 = arith.constant dense<0.000000e+00> : vector<16x32xf32>
      %56 = tpu.matmul %54, %55, %cst_35 {dimension_numbers = #tpu.dot_dimension_numbers<[1], [0], [0], [1], [0, 0, 1, 1], [], []>} : vector<16x32xf32>, vector<32x32xf32>, vector<16x32xf32> -> vector<16x32xf32>
      %c0_36 = arith.constant 0 : index
      %c0_37 = arith.constant 0 : index
      %57 = vector.load %arg10[%c0_36, %c0_37] : memref<1x32xf32, #tpu.memory_space<vmem>>, vector<1x32xf32>
      %58 = vector.broadcast %57 : vector<1x32xf32> to vector<16x32xf32>
      %59 = arith.addf %56, %58 : vector<16x32xf32>
      %cst_38 = arith.constant 5.000000e-01 : f32
      %60 = vector.broadcast %cst_38 : f32 to vector<16x32xf32>
      %61 = arith.mulf %60, %59 : vector<16x32xf32>
      %cst_39 = arith.constant 4.471500e-02 : f32
      %62 = vector.broadcast %cst_39 : f32 to vector<16x32xf32>
      %63 = arith.mulf %62, %59 : vector<16x32xf32>
      %64 = arith.mulf %63, %59 : vector<16x32xf32>
      %65 = arith.mulf %64, %59 : vector<16x32xf32>
      %66 = arith.addf %59, %65 : vector<16x32xf32>
      %cst_40 = arith.constant 0.797884583 : f32
      %67 = vector.broadcast %cst_40 : f32 to vector<16x32xf32>
      %68 = arith.mulf %67, %66 : vector<16x32xf32>
      %69 = math.tanh %68 : vector<16x32xf32>
      %cst_41 = arith.constant 1.000000e+00 : f32
      %70 = vector.broadcast %cst_41 : f32 to vector<16x32xf32>
      %71 = arith.addf %70, %69 : vector<16x32xf32>
      %72 = arith.mulf %61, %71 : vector<16x32xf32>
      %c0_42 = arith.constant 0 : index
      %c0_43 = arith.constant 0 : index
      %73 = vector.load %arg11[%c0_42, %c0_43] : memref<1x32xf32, #tpu.memory_space<vmem>>, vector<1x32xf32>
      %c0_44 = arith.constant 0 : index
      %c0_45 = arith.constant 0 : index
      %74 = vector.load %arg12[%c0_44, %c0_45] : memref<1x32xf32, #tpu.memory_space<vmem>>, vector<1x32xf32>
      %cst_46 = arith.constant dense<0.000000e+00> : vector<16xf32>
      %75 = vector.multi_reduction <add>, %72, %cst_46 [1] : vector<16x32xf32> to vector<16xf32>
      %76 = vector.shape_cast %75 : vector<16xf32> to vector<16x1xf32>
      %cst_47 = arith.constant 3.200000e+01 : f32
      %77 = vector.broadcast %cst_47 : f32 to vector<16x1xf32>
      %78 = arith.divf %76, %77 : vector<16x1xf32>
      %79 = vector.broadcast %78 : vector<16x1xf32> to vector<16x32xf32>
      %80 = arith.subf %72, %79 : vector<16x32xf32>
      %81 = arith.mulf %80, %80 : vector<16x32xf32>
      %cst_48 = arith.constant dense<0.000000e+00> : vector<16xf32>
      %82 = vector.multi_reduction <add>, %81, %cst_48 [1] : vector<16x32xf32> to vector<16xf32>
      %83 = vector.shape_cast %82 : vector<16xf32> to vector<16x1xf32>
      %cst_49 = arith.constant 3.200000e+01 : f32
      %84 = vector.broadcast %cst_49 : f32 to vector<16x1xf32>
      %85 = arith.divf %83, %84 : vector<16x1xf32>
      %cst_50 = arith.constant 9.99999996E-13 : f32
      %86 = vector.broadcast %cst_50 : f32 to vector<16x1xf32>
      %87 = arith.addf %85, %86 : vector<16x1xf32>
      %88 = math.rsqrt %87 : vector<16x1xf32>
      %89 = vector.broadcast %88 : vector<16x1xf32> to vector<16x32xf32>
      %90 = arith.mulf %80, %89 : vector<16x32xf32>
      %91 = vector.broadcast %73 : vector<1x32xf32> to vector<16x32xf32>
      %92 = arith.mulf %90, %91 : vector<16x32xf32>
      %93 = vector.broadcast %74 : vector<1x32xf32> to vector<16x32xf32>
      %94 = arith.addf %92, %93 : vector<16x32xf32>
      %c0_51 = arith.constant 0 : index
      %c0_52 = arith.constant 0 : index
      %95 = vector.load %arg16[%c0_51, %c0_52] : memref<16x32xf32, #tpu.memory_space<vmem>>, vector<16x32xf32>
      tpu.vector_store %arg16[%c0_51, %c0_52], %94 {strides = array<i32>} : memref<16x32xf32, #tpu.memory_space<vmem>>, vector<16x32xf32>,
    } else {
    }
    %c0 = arith.constant 0 : index
    %c0_1 = arith.constant 0 : index
    %3 = vector.load %arg16[%c0, %c0_1] : memref<16x32xf32, #tpu.memory_space<vmem>>, vector<16x32xf32>
    %c0_2 = arith.constant 0 : index
    %c0_3 = arith.constant 0 : index
    %4 = vector.load %arg13[%c0_2, %c0_3] : memref<32x256xf32, #tpu.memory_space<vmem>>, vector<32x256xf32>
    %cst = arith.constant dense<0.000000e+00> : vector<16x256xf32>
    %5 = tpu.matmul %3, %4, %cst {dimension_numbers = #tpu.dot_dimension_numbers<[1], [0], [0], [1], [0, 0, 1, 1], [], []>} : vector<16x32xf32>, vector<32x256xf32>, vector<16x256xf32> -> vector<16x256xf32>
    %c0_4 = arith.constant 0 : index
    %c0_5 = arith.constant 0 : index
    %6 = vector.load %arg14[%c0_4, %c0_5] : memref<1x256xf32, #tpu.memory_space<vmem>>, vector<1x256xf32>
    %7 = vector.broadcast %6 : vector<1x256xf32> to vector<16x256xf32>
    %8 = arith.addf %5, %7 : vector<16x256xf32>
    %c0_6 = arith.constant 0 : index
    %c0_7 = arith.constant 0 : index
    %9 = vector.load %arg15[%c0_6, %c0_7] : memref<16x256xf32, #tpu.memory_space<vmem>>, vector<16x256xf32>
    tpu.vector_store %arg15[%c0_6, %c0_7], %8 {strides = array<i32>} : memref<16x256xf32, #tpu.memory_space<vmem>>, vector<16x256xf32>,
    return
  }
  func.func @transform_0(%arg0: i32, %arg1: i32) -> (i32, i32) {
    %c0_i32 = arith.constant 0 : i32
    %c0_i32_0 = arith.constant 0 : i32
    return %arg0, %c0_i32 : i32, i32
  }
  func.func @transform_1(%arg0: i32, %arg1: i32) -> (i32, i32) {
    %c0_i32 = arith.constant 0 : i32
    %c0_i32_0 = arith.constant 0 : i32
    return %arg0, %c0_i32 : i32, i32
  }
  func.func @transform_2(%arg0: i32, %arg1: i32) -> (i32, i32) {
    %c0_i32 = arith.constant 0 : i32
    %c0_i32_0 = arith.constant 0 : i32
    %c0_i32_1 = arith.constant 0 : i32
    return %c0_i32, %c0_i32_0 : i32, i32
  }
  func.func @transform_3(%arg0: i32, %arg1: i32) -> (i32, i32) {
    %c0_i32 = arith.constant 0 : i32
    %c0_i32_0 = arith.constant 0 : i32
    %c0_i32_1 = arith.constant 0 : i32
    return %c0_i32, %c0_i32_0 : i32, i32
  }
  func.func @transform_4(%arg0: i32, %arg1: i32) -> (i32, i32) {
    %c0_i32 = arith.constant 0 : i32
    %c0_i32_0 = arith.constant 0 : i32
    %c0_i32_1 = arith.constant 0 : i32
    return %c0_i32, %c0_i32_0 : i32, i32
  }
  func.func @transform_5(%arg0: i32, %arg1: i32) -> (i32, i32) {
    %c0_i32 = arith.constant 0 : i32
    %c0_i32_0 = arith.constant 0 : i32
    %c0_i32_1 = arith.constant 0 : i32
    return %c0_i32, %c0_i32_0 : i32, i32
  }
  func.func @transform_6(%arg0: i32, %arg1: i32) -> (i32, i32) {
    %c0_i32 = arith.constant 0 : i32
    %c0_i32_0 = arith.constant 0 : i32
    %c0_i32_1 = arith.constant 0 : i32
    return %c0_i32, %c0_i32_0 : i32, i32
  }
  func.func @transform_7(%arg0: i32, %arg1: i32) -> (i32, i32) {
    %c0_i32 = arith.constant 0 : i32
    %c0_i32_0 = arith.constant 0 : i32
    %c0_i32_1 = arith.constant 0 : i32
    return %c0_i32, %c0_i32_0 : i32, i32
  }
  func.func @transform_8(%arg0: i32, %arg1: i32) -> (i32, i32) {
    %c0_i32 = arith.constant 0 : i32
    %c0_i32_0 = arith.constant 0 : i32
    %c0_i32_1 = arith.constant 0 : i32
    return %c0_i32, %c0_i32_0 : i32, i32
  }
  func.func @transform_9(%arg0: i32, %arg1: i32) -> (i32, i32) {
    %c0_i32 = arith.constant 0 : i32
    %c0_i32_0 = arith.constant 0 : i32
    %c0_i32_1 = arith.constant 0 : i32
    return %c0_i32, %c0_i32_0 : i32, i32
  }
  func.func @transform_10(%arg0: i32, %arg1: i32) -> (i32, i32) {
    %c0_i32 = arith.constant 0 : i32
    %c0_i32_0 = arith.constant 0 : i32
    %c0_i32_1 = arith.constant 0 : i32
    return %c0_i32, %c0_i32_0 : i32, i32
  }
  func.func @transform_11(%arg0: i32, %arg1: i32) -> (i32, i32) {
    %c0_i32 = arith.constant 0 : i32
    %c0_i32_0 = arith.constant 0 : i32
    return %c0_i32, %arg1 : i32, i32
  }
  func.func @transform_12(%arg0: i32, %arg1: i32) -> (i32, i32) {
    %c0_i32 = arith.constant 0 : i32
    %c0_i32_0 = arith.constant 0 : i32
    return %c0_i32, %arg1 : i32, i32
  }
  func.func @transform_13(%arg0: i32, %arg1: i32) -> (i32, i32) {
    %c0_i32 = arith.constant 0 : i32
    return %arg0, %arg1 : i32, i32
  }
}

</mosaic_0001>

<llo_original>
// kernel: tpu_custom_call.1
$region0: #{tpu_custom_call.1}
  #allocation0 [shape = 'u32[]', space=smem, size = 0x4, offset = 0x4, fixed_abs, tag = 'smem constant byte address 0x4 - core index']
  #allocation1 [shape = 'u32[144,128]{1,0:T(1,128)}', space=vmem, size = 0x12000, scoped, tag = 'internal scratch']
  #allocation2 [shape = 'f32[16,32]{1,0:T(8,128)}', space=vmem, size = 0x2000, scoped, tag = 'scratch operand']
  %s0 = inlined_call_operand.hbm [shape: f32[16,32], index: 0, kind: input, shape index: {}]
  %s1 = inlined_call_operand.hbm [shape: f32[16,32], index: 1, kind: input, shape index: {}]
  %s2 = inlined_call_operand.hbm [shape: f32[32,32], index: 2, kind: input, shape index: {}]
  %s3 = inlined_call_operand.hbm [shape: f32[32,32], index: 3, kind: input, shape index: {}]
  %s4 = inlined_call_operand.vmem [shape: f32[1,32], index: 4, kind: input, shape index: {}]
  %s5 = inlined_call_operand.vmem [shape: f32[1,32], index: 5, kind: input, shape index: {}]
  %s6 = inlined_call_operand.vmem [shape: f32[1,32], index: 6, kind: input, shape index: {}]
  %s7 = inlined_call_operand.hbm [shape: f32[32,32], index: 7, kind: input, shape index: {}]
  %s8 = inlined_call_operand.vmem [shape: f32[1,32], index: 8, kind: input, shape index: {}]
  %s9 = inlined_call_operand.vmem [shape: f32[1,32], index: 9, kind: input, shape index: {}]
  %s10 = inlined_call_operand.vmem [shape: f32[1,32], index: 10, kind: input, shape index: {}]
  %s11 = inlined_call_operand.hbm [shape: f32[32,256], index: 11, kind: input, shape index: {}]
  %s12 = inlined_call_operand.vmem [shape: f32[1,256], index: 12, kind: input, shape index: {}]
  %s13 = inlined_call_operand.hbm [shape: f32[16,256], index: 13, kind: output, shape index: {}]
  %s14 = sld [smem:[#allocation0]]
  $region90: #{tpu_custom_call.1} parent=0
    _
  %s16 = ssub.s32 1, %s14
  %s17 = scalar_select 0, %s16, %s14
  $region1: #{tpu_custom_call.1} parent=0
    #allocation3 [shape = 'u8[8192]{0}', space=vmem, size = 0x2000, scoped, tag = 'input window, operand 0, single buffered']
    #allocation4 [shape = 's32[1]{0}', space=sflag, size = 0x4, scoped, tag = 'scoped memory for tpu_custom_call.1']
    #allocation5 [shape = 's32[1]{0}', space=sflag, size = 0x4, scoped, tag = 'scoped memory for tpu_custom_call.1']
    #allocation6 [shape = 'u8[8192]{0}', space=vmem, size = 0x2000, scoped, tag = 'input window, operand 1, single buffered']
    #allocation7 [shape = 's32[1]{0}', space=sflag, size = 0x4, scoped, tag = 'scoped memory for tpu_custom_call.1']
    #allocation8 [shape = 'u8[16384]{0}', space=vmem, size = 0x4000, scoped, tag = 'input window, operand 2, single buffered']
    #allocation9 [shape = 'u8[16384]{0}', space=vmem, size = 0x4000, scoped, tag = 'input window, operand 3, single buffered']
    #allocation10 [shape = 's32[1]{0}', space=sflag, size = 0x4, scoped, tag = 'scoped memory for tpu_custom_call.1']
    #allocation11 [shape = 'u8[16384]{0}', space=vmem, size = 0x4000, scoped, tag = 'input window, operand 7, single buffered']
    #allocation12 [shape = 'u8[32768]{0}', space=vmem, size = 0x8000, scoped, tag = 'input window, operand 11, single buffered']
    #allocation13 [shape = 's32[1]{0}', space=sflag, size = 0x4, scoped, tag = 'scoped memory for tpu_custom_call.1']
    #allocation14 [shape = 'u8[16384]{0}', space=vmem, size = 0x4000, scoped, tag = 'output window, operand 0, single buffered']
    %18 = vsyncpa [#allocation4], 0
    %19 = vsyncpa [#allocation7], 0
    %20 = vsyncpa [#allocation10], 0
    %21 = vsyncpa [#allocation13], 0
    %22 = vsyncpa [#allocation5], 0
    // Predicated region
    $region2: #{tpu_custom_call.1} parent=1 // pred_check
      _
    $region3: #{tpu_custom_call.1} parent=1 // pred_check_branch
      %24 = sbr.rel (0) target = $region5
    $region4: #{tpu_custom_call.1} parent=1 // pred_region
      %s26 = ssub.s32 256, 256
      %27 = vsyncadd [#allocation4], %s26
      %s28 = sshll.u32 [#allocation3], 4
      %s29 = int_to_ptr.vmem [resolvable:$true] %s28
      %34 = dma.hbm_to_vmem [thread:$0]  %s0, 256, %s29, [#allocation4], 128, 128, 8
    $region5: #{tpu_custom_call.1} parent=1 // pred_fallthru
      _
    // Predicated region
    $region6: #{tpu_custom_call.1} parent=1 // pred_check
      _
    $region7: #{tpu_custom_call.1} parent=1 // pred_check_branch
      %36 = sbr.rel (0) target = $region9
    $region8: #{tpu_custom_call.1} parent=1 // pred_region
      %s38 = ssub.s32 256, 256
      %39 = vsyncadd [#allocation7], %s38
      %s40 = sshll.u32 [#allocation6], 4
      %s41 = int_to_ptr.vmem [resolvable:$true] %s40
      %46 = dma.hbm_to_vmem [thread:$0]  %s1, 256, %s41, [#allocation7], 128, 128, 8
    $region9: #{tpu_custom_call.1} parent=1 // pred_fallthru
      _
    // Predicated region
    $region10: #{tpu_custom_call.1} parent=1 // pred_check
      _
    $region11: #{tpu_custom_call.1} parent=1 // pred_check_branch
      %48 = sbr.rel (0) target = $region13
    $region12: #{tpu_custom_call.1} parent=1 // pred_region
      %s50 = ssub.s32 512, 512
      %51 = vsyncadd [#allocation7], %s50
      %s52 = sshll.u32 [#allocation8], 4
      %s53 = int_to_ptr.vmem [resolvable:$true] %s52
      %58 = dma.hbm_to_vmem [thread:$0]  %s2, 512, %s53, [#allocation7], 128, 128, 8
    $region13: #{tpu_custom_call.1} parent=1 // pred_fallthru
      _
    // Predicated region
    $region14: #{tpu_custom_call.1} parent=1 // pred_check
      _
    $region15: #{tpu_custom_call.1} parent=1 // pred_check_branch
      %60 = sbr.rel (0) target = $region17
    $region16: #{tpu_custom_call.1} parent=1 // pred_region
      %s62 = ssub.s32 512, 512
      %63 = vsyncadd [#allocation10], %s62
      %s64 = sshll.u32 [#allocation9], 4
      %s65 = int_to_ptr.vmem [resolvable:$true] %s64
      %70 = dma.hbm_to_vmem [thread:$0]  %s3, 512, %s65, [#allocation10], 128, 128, 8
    $region17: #{tpu_custom_call.1} parent=1 // pred_fallthru
      _
    // Predicated region
    $region18: #{tpu_custom_call.1} parent=1 // pred_check
      _
    $region19: #{tpu_custom_call.1} parent=1 // pred_check_branch
      %72 = sbr.rel (0) target = $region21
    $region20: #{tpu_custom_call.1} parent=1 // pred_region
      _
    $region21: #{tpu_custom_call.1} parent=1 // pred_fallthru
      _
    // Predicated region
    $region22: #{tpu_custom_call.1} parent=1 // pred_check
      _
    $region23: #{tpu_custom_call.1} parent=1 // pred_check_branch
      %74 = sbr.rel (0) target = $region25
    $region24: #{tpu_custom_call.1} parent=1 // pred_region
      _
    $region25: #{tpu_custom_call.1} parent=1 // pred_fallthru
      _
    // Predicated region
    $region26: #{tpu_custom_call.1} parent=1 // pred_check
      _
    $region27: #{tpu_custom_call.1} parent=1 // pred_check_branch
      %76 = sbr.rel (0) target = $region29
    $region28: #{tpu_custom_call.1} parent=1 // pred_region
      _
    $region29: #{tpu_custom_call.1} parent=1 // pred_fallthru
      _
    // Predicated region
    $region30: #{tpu_custom_call.1} parent=1 // pred_check
      _
    $region31: #{tpu_custom_call.1} parent=1 // pred_check_branch
      %78 = sbr.rel (0) target = $region33
    $region32: #{tpu_custom_call.1} parent=1 // pred_region
      %s80 = ssub.s32 512, 512
      %81 = vsyncadd [#allocation10], %s80
      %s82 = sshll.u32 [#allocation11], 4
      %s83 = int_to_ptr.vmem [resolvable:$true] %s82
      %88 = dma.hbm_to_vmem [thread:$0]  %s7, 512, %s83, [#allocation10], 128, 128, 8
    $region33: #{tpu_custom_call.1} parent=1 // pred_fallthru
      _
    // Predicated region
    $region34: #{tpu_custom_call.1} parent=1 // pred_check
      _
    $region35: #{tpu_custom_call.1} parent=1 // pred_check_branch
      %90 = sbr.rel (0) target = $region37
    $region36: #{tpu_custom_call.1} parent=1 // pred_region
      _
    $region37: #{tpu_custom_call.1} parent=1 // pred_fallthru
      _
    // Predicated region
    $region38: #{tpu_custom_call.1} parent=1 // pred_check
      _
    $region39: #{tpu_custom_call.1} parent=1 // pred_check_branch
      %92 = sbr.rel (0) target = $region41
    $region40: #{tpu_custom_call.1} parent=1 // pred_region
      _
    $region41: #{tpu_custom_call.1} parent=1 // pred_fallthru
      _
    // Predicated region
    $region42: #{tpu_custom_call.1} parent=1 // pred_check
      _
    $region43: #{tpu_custom_call.1} parent=1 // pred_check_branch
      %94 = sbr.rel (0) target = $region45
    $region44: #{tpu_custom_call.1} parent=1 // pred_region
      _
    $region45: #{tpu_custom_call.1} parent=1 // pred_fallthru
      _
    // Predicated region
    $region46: #{tpu_custom_call.1} parent=1 // pred_check
      _
    $region47: #{tpu_custom_call.1} parent=1 // pred_check_branch
      %96 = sbr.rel (0) target = $region49
    $region48: #{tpu_custom_call.1} parent=1 // pred_region
      %s98 = ssub.s32 1024, 1024
      %99 = vsyncadd [#allocation13], %s98
      %s100 = sshll.u32 [#allocation12], 4
      %s101 = int_to_ptr.vmem [resolvable:$true] %s100
      %106 = dma.hbm_to_vmem [thread:$0]  %s11, 1024, %s101, [#allocation13], 256, 256, 16
    $region49: #{tpu_custom_call.1} parent=1 // pred_fallthru
      _
    // Predicated region
    $region50: #{tpu_custom_call.1} parent=1 // pred_check
      _
    $region51: #{tpu_custom_call.1} parent=1 // pred_check_branch
      %108 = sbr.rel (0) target = $region53
    $region52: #{tpu_custom_call.1} parent=1 // pred_region
      _
    $region53: #{tpu_custom_call.1} parent=1 // pred_fallthru
      _
    // Predicated region
    $region54: #{tpu_custom_call.1} parent=1 // pred_check
      _
    $region55: #{tpu_custom_call.1} parent=1 // pred_check_branch
      %110 = sbr.rel (0) target = $region57
    $region56: #{tpu_custom_call.1} parent=1 // pred_region
      %111 = dma.done [#allocation4], 256
    $region57: #{tpu_custom_call.1} parent=1 // pred_fallthru
      _
    // Predicated region
    $region58: #{tpu_custom_call.1} parent=1 // pred_check
      _
    $region59: #{tpu_custom_call.1} parent=1 // pred_check_branch
      %113 = sbr.rel (0) target = $region61
    $region60: #{tpu_custom_call.1} parent=1 // pred_region
      %114 = dma.done [#allocation7], 256
    $region61: #{tpu_custom_call.1} parent=1 // pred_fallthru
      _
    // Predicated region
    $region62: #{tpu_custom_call.1} parent=1 // pred_check
      _
    $region63: #{tpu_custom_call.1} parent=1 // pred_check_branch
      %116 = sbr.rel (0) target = $region65
    $region64: #{tpu_custom_call.1} parent=1 // pred_region
      %117 = dma.done [#allocation7], 512
    $region65: #{tpu_custom_call.1} parent=1 // pred_fallthru
      _
    // Predicated region
    $region66: #{tpu_custom_call.1} parent=1 // pred_check
      _
    $region67: #{tpu_custom_call.1} parent=1 // pred_check_branch
      %119 = sbr.rel (0) target = $region69
    $region68: #{tpu_custom_call.1} parent=1 // pred_region
      %120 = dma.done [#allocation10], 512
    $region69: #{tpu_custom_call.1} parent=1 // pred_fallthru
      _
    // Predicated region
    $region70: #{tpu_custom_call.1} parent=1 // pred_check
      _
    $region71: #{tpu_custom_call.1} parent=1 // pred_check_branch
      %122 = sbr.rel (0) target = $region73
    $region72: #{tpu_custom_call.1} parent=1 // pred_region
      %123 = dma.done [#allocation10], 512
    $region73: #{tpu_custom_call.1} parent=1 // pred_fallthru
      _
    // Predicated region
    $region74: #{tpu_custom_call.1} parent=1 // pred_check
      _
    $region75: #{tpu_custom_call.1} parent=1 // pred_check_branch
      %125 = sbr.rel (0) target = $region77
    $region76: #{tpu_custom_call.1} parent=1 // pred_region
      %126 = dma.done [#allocation13], 1024
    $region77: #{tpu_custom_call.1} parent=1 // pred_fallthru
      _
    %p127 = scmp.eq.s32.totalorder 0, 0
    // Predicated region
    $region78: #{tpu_custom_call.1} parent=1 // pred_check
      %p128 = pneg %p127
    $region79: #{tpu_custom_call.1} parent=1 // pred_check_branch
      %130 = sbr.rel (%p128) target = $region81
    $region80: #{tpu_custom_call.1} parent=1 // pred_region
      %v131 = vld [vmem:[#allocation3] sm:$0xff]
      %v132 = vld [vmem:[#allocation3 + $0x8] sm:$0xff]
      %v133 = vld [vmem:[#allocation6] sm:$0xff]
      %v134 = vld [vmem:[#allocation6 + $0x8] sm:$0xff]
      %v135 = vld [vmem:[#allocation8] sm:$0xff]
      %v136 = vld [vmem:[#allocation8 + $0x8] sm:$0xff]
      %v137 = vld [vmem:[#allocation8 + $0x10] sm:$0xff]
      %v138 = vld [vmem:[#allocation8 + $0x18] sm:$0xff]
      %v139 = vld [vmem:[#allocation9] sm:$0xff]
      %v140 = vld [vmem:[#allocation9 + $0x8] sm:$0xff]
      %v141 = vld [vmem:[#allocation9 + $0x10] sm:$0xff]
      %v142 = vld [vmem:[#allocation9 + $0x18] sm:$0xff]
      %vm143 = vcmask 261120
      %v145 = vsel %vm143, %v131, 0
      %v148 = vsel %vm143, %v132, 0
      %150 = vmatprep.subr.mxu0 0.0
      %151 = vmatpush1.msra.mxu0 0.0
      %152 = vmatprep.subr.mxu0 0.0
      %153 = vmatpush1.msra.mxu0 0.0
      %154 = vmatprep.subr.mxu0 0.0
      %155 = vmatpush1.msra.mxu0 0.0
      %156 = vmatprep.subr.mxu0 0.0
      %157 = vmatpush1.msra.mxu0 0.0
      %158 = vmatprep.subr.mxu0 0.0
      %159 = vmatpush1.msra.mxu0 0.0
      %160 = vmatprep.subr.mxu0 0.0
      %161 = vmatpush1.msra.mxu0 0.0
      %162 = vmatprep.subr.mxu0 0.0
      %163 = vmatpush1.msra.mxu0 0.0
      %164 = vmatprep.subr.mxu0 0.0
      %165 = vmatpush1.msra.mxu0 0.0
      %166 = vmatprep.subr.mxu0 0.0
      %167 = vmatpush1.msra.mxu0 0.0
      %168 = vmatprep.subr.mxu0 0.0
      %169 = vmatpush1.msra.mxu0 0.0
      %170 = vmatprep.subr.mxu0 0.0
      %171 = vmatpush1.msra.mxu0 0.0
      %172 = vmatprep.subr.mxu0 0.0
      %173 = vmatpush1.msra.mxu0 0.0
      %174 = vmatprep.subr.mxu0 0.0
      %175 = vmatpush1.msra.mxu0 %v142
      %176 = vmatprep.subr.mxu0 0.0
      %177 = vmatpush1.msra.mxu0 %v141
      %178 = vmatprep.subr.mxu0 0.0
      %179 = vmatpush1.msra.mxu0 %v140
      %180 = vmatprep.subr.mxu0 0.0
      %181 = vmatpush1.msra.mxu0 %v139
      %182 = vmatprep.subr.mxu0 0.0
      %183 = vmatpush2.msra.mxu0 0.0
      %184 = vmatprep.subr.mxu0 0.0
      %185 = vmatpush2.msra.mxu0 0.0
      %186 = vmatprep.subr.mxu0 0.0
      %187 = vmatpush2.msra.mxu0 0.0
      %188 = vmatprep.subr.mxu0 0.0
      %189 = vmatpush2.msra.mxu0 0.0
      %190 = vmatprep.subr.mxu0 0.0
      %191 = vmatpush2.msra.mxu0 0.0
      %192 = vmatprep.subr.mxu0 0.0
      %193 = vmatpush2.msra.mxu0 0.0
      %194 = vmatprep.subr.mxu0 0.0
      %195 = vmatpush2.msra.mxu0 0.0
      %196 = vmatprep.subr.mxu0 0.0
      %197 = vmatpush2.msra.mxu0 0.0
      %198 = vmatprep.subr.mxu0 0.0
      %199 = vmatpush2.msra.mxu0 0.0
      %200 = vmatprep.subr.mxu0 0.0
      %201 = vmatpush2.msra.mxu0 0.0
      %202 = vmatprep.subr.mxu0 0.0
      %203 = vmatpush2.msra.mxu0 0.0
      %204 = vmatprep.subr.mxu0 0.0
      %205 = vmatpush2.msra.mxu0 0.0
      %206 = vmatprep.subr.mxu0 0.0
      %207 = vmatpush2.msra.mxu0 0.0
      %208 = vmatprep.subr.mxu0 0.0
      %209 = vmatpush2.msra.mxu0 0.0
      %210 = vmatprep.subr.mxu0 0.0
      %211 = vmatpush2.msra.mxu0 0.0
      %212 = vmatprep.subr.mxu0 0.0
      %213 = vmatpush2.msra.mxu0 0.0
      %214 = vmatprep.mubr.f32.mxu0 0.0
      %215 = vmatmul.mubr.f32.gmra.mxu0 %v145
      %v216 = vpop.f32.mrf.mxu0
      %v217 = vadd.f32 0.0, %v216
      %v218 = vpop.f32.mrf.mxu0
      %219 = vmatprep.mubr.f32.mxu0 0.0
      %220 = vmatmul.mubr.f32.gmra.mxu0 %v148
      %v221 = vpop.f32.mrf.mxu0
      %v222 = vadd.f32 0.0, %v221
      %v223 = vpop.f32.mrf.mxu0
      %224 = vdwg.mxu0
      %v226 = vsel %vm143, %v133, 0
      %v229 = vsel %vm143, %v134, 0
      %231 = vmatprep.subr.mxu0 0.0
      %232 = vmatpush1.msra.mxu0 0.0
      %233 = vmatprep.subr.mxu0 0.0
      %234 = vmatpush1.msra.mxu0 0.0
      %235 = vmatprep.subr.mxu0 0.0
      %236 = vmatpush1.msra.mxu0 0.0
      %237 = vmatprep.subr.mxu0 0.0
      %238 = vmatpush1.msra.mxu0 0.0
      %239 = vmatprep.subr.mxu0 0.0
      %240 = vmatpush1.msra.mxu0 0.0
      %241 = vmatprep.subr.mxu0 0.0
      %242 = vmatpush1.msra.mxu0 0.0
      %243 = vmatprep.subr.mxu0 0.0
      %244 = vmatpush1.msra.mxu0 0.0
      %245 = vmatprep.subr.mxu0 0.0
      %246 = vmatpush1.msra.mxu0 0.0
      %247 = vmatprep.subr.mxu0 0.0
      %248 = vmatpush1.msra.mxu0 0.0
      %249 = vmatprep.subr.mxu0 0.0
      %250 = vmatpush1.msra.mxu0 0.0
      %251 = vmatprep.subr.mxu0 0.0
      %252 = vmatpush1.msra.mxu0 0.0
      %253 = vmatprep.subr.mxu0 0.0
      %254 = vmatpush1.msra.mxu0 0.0
      %255 = vmatprep.subr.mxu0 0.0
      %256 = vmatpush1.msra.mxu0 %v138
      %257 = vmatprep.subr.mxu0 0.0
      %258 = vmatpush1.msra.mxu0 %v137
      %259 = vmatprep.subr.mxu0 0.0
      %260 = vmatpush1.msra.mxu0 %v136
      %261 = vmatprep.subr.mxu0 0.0
      %262 = vmatpush1.msra.mxu0 %v135
      %263 = vmatprep.subr.mxu0 0.0
      %264 = vmatpush2.msra.mxu0 0.0
      %265 = vmatprep.subr.mxu0 0.0
      %266 = vmatpush2.msra.mxu0 0.0
      %267 = vmatprep.subr.mxu0 0.0
      %268 = vmatpush2.msra.mxu0 0.0
      %269 = vmatprep.subr.mxu0 0.0
      %270 = vmatpush2.msra.mxu0 0.0
      %271 = vmatprep.subr.mxu0 0.0
      %272 = vmatpush2.msra.mxu0 0.0
      %273 = vmatprep.subr.mxu0 0.0
      %274 = vmatpush2.msra.mxu0 0.0
      %275 = vmatprep.subr.mxu0 0.0
      %276 = vmatpush2.msra.mxu0 0.0
      %277 = vmatprep.subr.mxu0 0.0
      %278 = vmatpush2.msra.mxu0 0.0
      %279 = vmatprep.subr.mxu0 0.0
      %280 = vmatpush2.msra.mxu0 0.0
      %281 = vmatprep.subr.mxu0 0.0
      %282 = vmatpush2.msra.mxu0 0.0
      %283 = vmatprep.subr.mxu0 0.0
      %284 = vmatpush2.msra.mxu0 0.0
      %285 = vmatprep.subr.mxu0 0.0
      %286 = vmatpush2.msra.mxu0 0.0
      %287 = vmatprep.subr.mxu0 0.0
      %288 = vmatpush2.msra.mxu0 0.0
      %289 = vmatprep.subr.mxu0 0.0
      %290 = vmatpush2.msra.mxu0 0.0
      %291 = vmatprep.subr.mxu0 0.0
      %292 = vmatpush2.msra.mxu0 0.0
      %293 = vmatprep.subr.mxu0 0.0
      %294 = vmatpush2.msra.mxu0 0.0
      %295 = vmatprep.mubr.f32.mxu0 0.0
      %296 = vmatmul.mubr.f32.gmra.mxu0 %v226
      %v297 = vpop.f32.mrf.mxu0
      %v298 = vadd.f32 %v217, %v297
      %v299 = vpop.f32.mrf.mxu0
      %300 = vmatprep.mubr.f32.mxu0 0.0
      %301 = vmatmul.mubr.f32.gmra.mxu0 %v229
      %v302 = vpop.f32.mrf.mxu0
      %v303 = vadd.f32 %v222, %v302
      %v304 = vpop.f32.mrf.mxu0
      %305 = vdwg.mxu0
      %v306 = vld [vmem:[%s4] sm:$0x1]
      %v308 = vlaneseq
      %v309 = vshrl.u32 %v308, 7
      %v310 = vsub.s32 0, %v309
      %v311 = vrot.slane %v306, %v310
      %v313 = vadd.f32 %v298, %v311
      %v314 = vadd.f32 %v303, %v311
      %v315 = vmul.f32 %v313, 0.5
      %v316 = vmul.f32 %v314, 0.5
      %v317 = vmul.f32 %v313, 0.044715
      %v318 = vmul.f32 %v314, 0.044715
      %v319 = vmul.f32 %v317, %v313
      %v320 = vmul.f32 %v318, %v314
      %v321 = vmul.f32 %v319, %v313
      %v322 = vmul.f32 %v320, %v314
      %v323 = vadd.f32 %v313, %v321
      %v324 = vadd.f32 %v314, %v322
      %v325 = vmul.f32 %v323, 0.7978846
      %v326 = vmul.f32 %v324, 0.7978846
      %v327 = vtanh.pop %v325
      %v328 = vtanh.pop %v326
      %v329 = vadd.f32 %v327, 1.0
      %v330 = vadd.f32 %v328, 1.0
      %v331 = vmul.f32 %v315, %v329
      %v332 = vmul.f32 %v316, %v330
      %v333 = vld [vmem:[%s5] sm:$0x1]
      %v334 = vld [vmem:[%s6] sm:$0x1]
      %v335 = vsel %vm143, %v331, 0.0
      %336 = vadd.xlane.f32.xlu0 %v335
      %v337 = vpop.xlane.xlu0 %336
      %v338 = vsel %vm143, %v332, 0.0
      %339 = vadd.xlane.f32.xlu0 %v338
      %v340 = vpop.xlane.xlu0 %339
      %v341 = vrcp.pop 32.0
      %v342 = vmul.f32 %v337, %v341
      %v343 = vmul.f32 %v340, %v341
      %v344 = vsub.f32 %v331, %v342
      %v345 = vsub.f32 %v332, %v343
      %v346 = vmul.f32 %v344, %v344
      %v347 = vmul.f32 %v345, %v345
      %v348 = vsel %vm143, %v346, 0.0
      %349 = vadd.xlane.f32.xlu0 %v348
      %v350 = vpop.xlane.xlu0 %349
      %v351 = vsel %vm143, %v347, 0.0
      %352 = vadd.xlane.f32.xlu0 %v351
      %v353 = vpop.xlane.xlu0 %352
      %v354 = vmul.f32 %v350, %v341
      %v355 = vmul.f32 %v353, %v341
      %v356 = vadd.f32 %v354, 1e-12
      %v357 = vadd.f32 %v355, 1e-12
      %v358 = vrsqrt.pop %v356
      %v359 = vrsqrt.pop %v357
      %v360 = vmul.f32 %v344, %v358
      %v361 = vmul.f32 %v345, %v359
      %v363 = vlaneseq
      %v364 = vshrl.u32 %v363, 7
      %v365 = vsub.s32 0, %v364
      %v366 = vrot.slane %v333, %v365
      %v368 = vmul.f32 %v360, %v366
      %v369 = vmul.f32 %v361, %v366
      %v371 = vlaneseq
      %v372 = vshrl.u32 %v371, 7
      %v373 = vsub.s32 0, %v372
      %v374 = vrot.slane %v334, %v373
      %v376 = vadd.f32 %v368, %v374
      %v377 = vadd.f32 %v369, %v374
      %v378 = vld [vmem:[#allocation11] sm:$0xff]
      %v379 = vld [vmem:[#allocation11 + $0x8] sm:$0xff]
      %v380 = vld [vmem:[#allocation11 + $0x10] sm:$0xff]
      %v381 = vld [vmem:[#allocation11 + $0x18] sm:$0xff]
      %v382 = vld [vmem:[%s8] sm:$0x1]
      %v384 = vlaneseq
      %v385 = vshrl.u32 %v384, 7
      %v386 = vsub.s32 0, %v385
      %v387 = vrot.slane %v382, %v386
      %v390 = vsel %vm143, %v376, 0
      %v393 = vsel %vm143, %v377, 0
      %395 = vmatprep.subr.mxu0 0.0
      %396 = vmatpush1.msra.mxu0 0.0
      %397 = vmatprep.subr.mxu0 0.0
      %398 = vmatpush1.msra.mxu0 0.0
      %399 = vmatprep.subr.mxu0 0.0
      %400 = vmatpush1.msra.mxu0 0.0
      %401 = vmatprep.subr.mxu0 0.0
      %402 = vmatpush1.msra.mxu0 0.0
      %403 = vmatprep.subr.mxu0 0.0
      %404 = vmatpush1.msra.mxu0 0.0
      %405 = vmatprep.subr.mxu0 0.0
      %406 = vmatpush1.msra.mxu0 0.0
      %407 = vmatprep.subr.mxu0 0.0
      %408 = vmatpush1.msra.mxu0 0.0
      %409 = vmatprep.subr.mxu0 0.0
      %410 = vmatpush1.msra.mxu0 0.0
      %411 = vmatprep.subr.mxu0 0.0
      %412 = vmatpush1.msra.mxu0 0.0
      %413 = vmatprep.subr.mxu0 0.0
      %414 = vmatpush1.msra.mxu0 0.0
      %415 = vmatprep.subr.mxu0 0.0
      %416 = vmatpush1.msra.mxu0 0.0
      %417 = vmatprep.subr.mxu0 0.0
      %418 = vmatpush1.msra.mxu0 0.0
      %419 = vmatprep.subr.mxu0 0.0
      %420 = vmatpush1.msra.mxu0 %v381
      %421 = vmatprep.subr.mxu0 0.0
      %422 = vmatpush1.msra.mxu0 %v380
      %423 = vmatprep.subr.mxu0 0.0
      %424 = vmatpush1.msra.mxu0 %v379
      %425 = vmatprep.subr.mxu0 0.0
      %426 = vmatpush1.msra.mxu0 %v378
      %427 = vmatprep.subr.mxu0 0.0
      %428 = vmatpush2.msra.mxu0 0.0
      %429 = vmatprep.subr.mxu0 0.0
      %430 = vmatpush2.msra.mxu0 0.0
      %431 = vmatprep.subr.mxu0 0.0
      %432 = vmatpush2.msra.mxu0 0.0
      %433 = vmatprep.subr.mxu0 0.0
      %434 = vmatpush2.msra.mxu0 0.0
      %435 = vmatprep.subr.mxu0 0.0
      %436 = vmatpush2.msra.mxu0 0.0
      %437 = vmatprep.subr.mxu0 0.0
      %438 = vmatpush2.msra.mxu0 0.0
      %439 = vmatprep.subr.mxu0 0.0
      %440 = vmatpush2.msra.mxu0 0.0
      %441 = vmatprep.subr.mxu0 0.0
      %442 = vmatpush2.msra.mxu0 0.0
      %443 = vmatprep.subr.mxu0 0.0
      %444 = vmatpush2.msra.mxu0 0.0
      %445 = vmatprep.subr.mxu0 0.0
      %446 = vmatpush2.msra.mxu0 0.0
      %447 = vmatprep.subr.mxu0 0.0
      %448 = vmatpush2.msra.mxu0 0.0
      %449 = vmatprep.subr.mxu0 0.0
      %450 = vmatpush2.msra.mxu0 0.0
      %451 = vmatprep.subr.mxu0 0.0
      %452 = vmatpush2.msra.mxu0 0.0
      %453 = vmatprep.subr.mxu0 0.0
      %454 = vmatpush2.msra.mxu0 0.0
      %455 = vmatprep.subr.mxu0 0.0
      %456 = vmatpush2.msra.mxu0 0.0
      %457 = vmatprep.subr.mxu0 0.0
      %458 = vmatpush2.msra.mxu0 0.0
      %459 = vmatprep.mubr.f32.mxu0 0.0
      %460 = vmatmul.mubr.f32.gmra.mxu0 %v390
      %v461 = vpop.f32.mrf.mxu0
      %v462 = vadd.f32 %v387, %v461
      %v463 = vpop.f32.mrf.mxu0
      %464 = vmatprep.mubr.f32.mxu0 0.0
      %465 = vmatmul.mubr.f32.gmra.mxu0 %v393
      %v466 = vpop.f32.mrf.mxu0
      %v467 = vadd.f32 %v387, %v466
      %v468 = vpop.f32.mrf.mxu0
      %469 = vdwg.mxu0
      %v470 = vmul.f32 %v462, 0.5
      %v471 = vmul.f32 %v467, 0.5
      %v472 = vmul.f32 %v462, 0.044715
      %v473 = vmul.f32 %v467, 0.044715
      %v474 = vmul.f32 %v472, %v462
      %v475 = vmul.f32 %v473, %v467
      %v476 = vmul.f32 %v474, %v462
      %v477 = vmul.f32 %v475, %v467
      %v478 = vadd.f32 %v462, %v476
      %v479 = vadd.f32 %v467, %v477
      %v480 = vmul.f32 %v478, 0.7978846
      %v481 = vmul.f32 %v479, 0.7978846
      %v482 = vtanh.pop %v480
      %v483 = vtanh.pop %v481
      %v484 = vadd.f32 %v482, 1.0
      %v485 = vadd.f32 %v483, 1.0
      %v486 = vmul.f32 %v470, %v484
      %v487 = vmul.f32 %v471, %v485
      %v488 = vld [vmem:[%s9] sm:$0x1]
      %v489 = vld [vmem:[%s10] sm:$0x1]
      %v490 = vsel %vm143, %v486, 0.0
      %491 = vadd.xlane.f32.xlu0 %v490
      %v492 = vpop.xlane.xlu0 %491
      %v493 = vsel %vm143, %v487, 0.0
      %494 = vadd.xlane.f32.xlu0 %v493
      %v495 = vpop.xlane.xlu0 %494
      %v496 = vmul.f32 %v492, %v341
      %v497 = vmul.f32 %v495, %v341
      %v498 = vsub.f32 %v486, %v496
      %v499 = vsub.f32 %v487, %v497
      %v500 = vmul.f32 %v498, %v498
      %v501 = vmul.f32 %v499, %v499
      %v502 = vsel %vm143, %v500, 0.0
      %503 = vadd.xlane.f32.xlu0 %v502
      %v504 = vpop.xlane.xlu0 %503
      %v505 = vsel %vm143, %v501, 0.0
      %506 = vadd.xlane.f32.xlu0 %v505
      %v507 = vpop.xlane.xlu0 %506
      %v508 = vmul.f32 %v504, %v341
      %v509 = vmul.f32 %v507, %v341
      %v510 = vadd.f32 %v508, 1e-12
      %v511 = vadd.f32 %v509, 1e-12
      %v512 = vrsqrt.pop %v510
      %v513 = vrsqrt.pop %v511
      %v514 = vmul.f32 %v498, %v512
      %v515 = vmul.f32 %v499, %v513
      %v517 = vlaneseq
      %v518 = vshrl.u32 %v517, 7
      %v519 = vsub.s32 0, %v518
      %v520 = vrot.slane %v488, %v519
      %v522 = vmul.f32 %v514, %v520
      %v523 = vmul.f32 %v515, %v520
      %v525 = vlaneseq
      %v526 = vshrl.u32 %v525, 7
      %v527 = vsub.s32 0, %v526
      %v528 = vrot.slane %v489, %v527
      %v530 = vadd.f32 %v522, %v528
      %v531 = vadd.f32 %v523, %v528
      %532 = vst.msk [vmem:[#allocation2] sm:$0xff] %vm143, %v530
      %533 = vst.msk [vmem:[#allocation2 + $0x8] sm:$0xff] %vm143, %v531
    $region81: #{tpu_custom_call.1} parent=1 // pred_fallthru
      _
    %v534 = vld [vmem:[#allocation2] sm:$0xff]
    %v535 = vld [vmem:[#allocation2 + $0x8] sm:$0xff]
    %v536 = vld [vmem:[#allocation12] sm:$0xff]
    %v537 = vld [vmem:[#allocation12 + $0x8] sm:$0xff]
    %v538 = vld [vmem:[#allocation12 + $0x10] sm:$0xff]
    %v539 = vld [vmem:[#allocation12 + $0x18] sm:$0xff]
    %v540 = vld [vmem:[#allocation12 + $0x20] sm:$0xff]
    %v541 = vld [vmem:[#allocation12 + $0x28] sm:$0xff]
    %v542 = vld [vmem:[#allocation12 + $0x30] sm:$0xff]
    %v543 = vld [vmem:[#allocation12 + $0x38] sm:$0xff]
    %v544 = vld [vmem:[%s12] sm:$0x3]
    %v546 = vlaneseq
    %v547 = vshrl.u32 %v546, 7
    %v548 = vsub.s32 0, %v547
    %v549 = vrot.slane %v544, %v548
    %v550 = vlaneseq
    %v551 = vshrl.u32 %v550, 7
    %v552 = vsub.s32 1, %v551
    %v553 = vrot.slane %v544, %v552
    %vm556 = vcmask 261120
    %v558 = vsel %vm556, %v534, 0
    %v561 = vsel %vm556, %v535, 0
    %563 = vmatprep.subr.mxu0 0.0
    %564 = vmatpush1.msra.mxu0 0.0
    %565 = vmatprep.subr.mxu0 0.0
    %566 = vmatpush1.msra.mxu0 0.0
    %567 = vmatprep.subr.mxu0 0.0
    %568 = vmatpush1.msra.mxu0 0.0
    %569 = vmatprep.subr.mxu0 0.0
    %570 = vmatpush1.msra.mxu0 0.0
    %571 = vmatprep.subr.mxu0 0.0
    %572 = vmatpush1.msra.mxu0 0.0
    %573 = vmatprep.subr.mxu0 0.0
    %574 = vmatpush1.msra.mxu0 0.0
    %575 = vmatprep.subr.mxu0 0.0
    %576 = vmatpush1.msra.mxu0 0.0
    %577 = vmatprep.subr.mxu0 0.0
    %578 = vmatpush1.msra.mxu0 0.0
    %579 = vmatprep.subr.mxu0 0.0
    %580 = vmatpush1.msra.mxu0 0.0
    %581 = vmatprep.subr.mxu0 0.0
    %582 = vmatpush1.msra.mxu0 0.0
    %583 = vmatprep.subr.mxu0 0.0
    %584 = vmatpush1.msra.mxu0 0.0
    %585 = vmatprep.subr.mxu0 0.0
    %586 = vmatpush1.msra.mxu0 0.0
    %587 = vmatprep.subr.mxu0 %v543
    %588 = vmatpush1.msra.mxu0 %v542
    %589 = vmatprep.subr.mxu0 %v541
    %590 = vmatpush1.msra.mxu0 %v540
    %591 = vmatprep.subr.mxu0 %v539
    %592 = vmatpush1.msra.mxu0 %v538
    %593 = vmatprep.subr.mxu0 %v537
    %594 = vmatpush1.msra.mxu0 %v536
    %595 = vmatprep.subr.mxu0 0.0
    %596 = vmatpush2.msra.mxu0 0.0
    %597 = vmatprep.subr.mxu0 0.0
    %598 = vmatpush2.msra.mxu0 0.0
    %599 = vmatprep.subr.mxu0 0.0
    %600 = vmatpush2.msra.mxu0 0.0
    %601 = vmatprep.subr.mxu0 0.0
    %602 = vmatpush2.msra.mxu0 0.0
    %603 = vmatprep.subr.mxu0 0.0
    %604 = vmatpush2.msra.mxu0 0.0
    %605 = vmatprep.subr.mxu0 0.0
    %606 = vmatpush2.msra.mxu0 0.0
    %607 = vmatprep.subr.mxu0 0.0
    %608 = vmatpush2.msra.mxu0 0.0
    %609 = vmatprep.subr.mxu0 0.0
    %610 = vmatpush2.msra.mxu0 0.0
    %611 = vmatprep.subr.mxu0 0.0
    %612 = vmatpush2.msra.mxu0 0.0
    %613 = vmatprep.subr.mxu0 0.0
    %614 = vmatpush2.msra.mxu0 0.0
    %615 = vmatprep.subr.mxu0 0.0
    %616 = vmatpush2.msra.mxu0 0.0
    %617 = vmatprep.subr.mxu0 0.0
    %618 = vmatpush2.msra.mxu0 0.0
    %619 = vmatprep.subr.mxu0 0.0
    %620 = vmatpush2.msra.mxu0 0.0
    %621 = vmatprep.subr.mxu0 0.0
    %622 = vmatpush2.msra.mxu0 0.0
    %623 = vmatprep.subr.mxu0 0.0
    %624 = vmatpush2.msra.mxu0 0.0
    %625 = vmatprep.subr.mxu0 0.0
    %626 = vmatpush2.msra.mxu0 0.0
    %627 = vmatprep.mubr.f32.mxu0 0.0
    %628 = vmatmul.mubr.f32.gmra.mxu0 %v558
    %v629 = vpop.f32.mrf.mxu0
    %v630 = vadd.f32 %v549, %v629
    %v631 = vpop.f32.mrf.mxu0
    %v632 = vadd.f32 %v553, %v631
    %633 = vmatprep.mubr.f32.mxu0 0.0
    %634 = vmatmul.mubr.f32.gmra.mxu0 %v561
    %v635 = vpop.f32.mrf.mxu0
    %v636 = vadd.f32 %v549, %v635
    %v637 = vpop.f32.mrf.mxu0
    %v638 = vadd.f32 %v553, %v637
    %639 = vdwg.mxu0
    %640 = vst [vmem:[#allocation14] sm:$0xff] %v630
    %641 = vst [vmem:[#allocation14 + $0x8] sm:$0xff] %v632
    %642 = vst [vmem:[#allocation14 + $0x10] sm:$0xff] %v636
    %643 = vst [vmem:[#allocation14 + $0x18] sm:$0xff] %v638
    // Predicated region
    $region82: #{tpu_custom_call.1} parent=1 // pred_check
      _
    $region83: #{tpu_custom_call.1} parent=1 // pred_check_branch
      %645 = sbr.rel (0) target = $region85
    $region84: #{tpu_custom_call.1} parent=1 // pred_region
      %s647 = ssub.s32 512, 512
      %648 = vsyncadd [#allocation5], %s647
      %s649 = sshll.u32 [#allocation14], 4
      %s650 = int_to_ptr.vmem [resolvable:$true] %s649
      %655 = dma.vmem_to_hbm [thread:$0]  %s650, 512, %s13, [#allocation5], 256, 256, 16
    $region85: #{tpu_custom_call.1} parent=1 // pred_fallthru
      _
    // Predicated region
    $region86: #{tpu_custom_call.1} parent=1 // pred_check
      _
    $region87: #{tpu_custom_call.1} parent=1 // pred_check_branch
      %657 = sbr.rel (0) target = $region89
    $region88: #{tpu_custom_call.1} parent=1 // pred_region
      %658 = dma.done [#allocation5], 512
    $region89: #{tpu_custom_call.1} parent=1 // pred_fallthru
      _
    %659 = vsyncpa [#allocation4], 1
    %660 = vsyncpa [#allocation7], 1
    %661 = vsyncpa [#allocation10], 1
    %662 = vsyncpa [#allocation13], 1
    %663 = vsyncpa [#allocation5], 1

</llo_original>
